<compile_context>
chip_gen: v7x
topology: tpu7x:2x2x1
jax: 0.10.0
libtpu: 0.0.40
codegen_flags: <defaults>
</compile_context>

<pallas_src>
import functools
import math

import jax
import jax.numpy as jnp
from jax.experimental import pallas as pl
from jax.experimental.pallas import tpu as pltpu

_LANES = 128
_TILE_ROWS = 2048          # single-step kernel: 2048 x 128 x 4 B = 1 MiB/tensor/step
_SCAN_TILE_ROWS = 1024     # fused-T kernel keeps 3 state tiles resident -> smaller tile
_MIN_SPLIT_ROWS = 64       # below this a single full-extent block is cheapest
_RAGGED_FULL_ELEMS = 65536 # ragged sizes up to this run as one full 1-D block (no pad)
_VMEM_HEADROOM = 4 << 20


def _round_up(n, m):
    return -(-n // m) * m


def _pick_row_tile(rows, max_rows):
    """Row-tile size: full extent for tiny slabs, else >=4 multiple-of-8 tiles."""
    if rows < _MIN_SPLIT_ROWS:
        return rows                                   # full-extent single block
    tile = _round_up(pl.cdiv(rows, 4), 8)             # >=4 tiles -> both v7x TCs busy
    return max(8, min(max_rows, tile))                # cap to amortize per-step overhead


# ----------------------------------------------------------------------------
# Kernels
# ----------------------------------------------------------------------------
def _snn_kernel(mem_ref, spike_ref, sum_ref, x_ref,
                new_spike_ref, new_mem_ref, new_sum_ref, *, th):
    new_mem = mem_ref[...] - spike_ref[...] + x_ref[...]
    th_v = jnp.asarray(th, new_mem.dtype)
    new_spike = jnp.where(new_mem >= th_v, th_v, jnp.zeros_like(new_mem))
    new_mem_ref[...] = new_mem
    new_spike_ref[...] = new_spike
    new_sum_ref[...] = sum_ref[...] + new_spike


def _snn_scan_kernel(mem_ref, spike_ref, sum_ref, x_ref,
                     spikes_ref, mem_out_ref, spike_out_ref, sum_out_ref,
                     mem_s, spike_s, sum_s, *, th):
    t = pl.program_id(1)

    @pl.when(t == 0)
    def _init():                                      # load state once per row tile
        mem_s[...] = mem_ref[...]
        spike_s[...] = spike_ref[...]
        sum_s[...] = sum_ref[...]

    new_mem = mem_s[...] - spike_s[...] + x_ref[0]
    th_v = jnp.asarray(th, new_mem.dtype)
    new_spike = jnp.where(new_mem >= th_v, th_v, jnp.zeros_like(new_mem))
    mem_s[...] = new_mem
    spike_s[...] = new_spike
    sum_s[...] = sum_s[...] + new_spike
    spikes_ref[0] = new_spike                         # per-step spike output (streamed)

    @pl.when(t == pl.num_programs(1) - 1)
    def _finalize():                                  # write state back once per tile
        mem_out_ref[...] = mem_s[...]
        spike_out_ref[...] = spike_s[...]
        sum_out_ref[...] = sum_s[...]


# ----------------------------------------------------------------------------
# Single-timestep wrapper (matches SNNActivation.forward)
# ----------------------------------------------------------------------------
def snn_activation(x, mem, spike, sum_spike, th, *, tile_rows=_TILE_ROWS):
    """One SNNActivation step.  Returns (new_spike, new_mem, new_sum_spike).

    For a true in-place state update, call under jit with the state buffers
    donated: jax.jit(snn_activation, static_argnums=4, donate_argnums=(1,2,3)).
    `th` must be a concrete Python/NumPy scalar.
    """
    orig_shape = x.shape
    dtype = x.dtype
    itemsize = jnp.dtype(dtype).itemsize
    total = math.prod(orig_shape) if orig_shape else 1
    th = float(th)

    needs_pad = False
    if total % _LANES == 0 or total > _RAGGED_FULL_ELEMS:
        # Lane-dense 2-D slab.  Free reshape when total % 128 == 0; large ragged
        # sizes pad once.  TODO(synk): pad-free tiled handling of large ragged
        # sizes (padding costs 2 extra HBM passes and aliases the padded
        # temporaries instead of the caller's buffers).
        needs_pad = (total % _LANES) != 0
        rows = pl.cdiv(total, _LANES)
        tile_r = _pick_row_tile(rows, tile_rows)
        work_shape = (rows, _LANES)
        grid = (pl.cdiv(rows, tile_r),)
        block = pl.BlockSpec((tile_r, _LANES), lambda i: (i, 0))
        tile_elems = tile_r * _LANES
        vmem_limit = max(7 * 2 * tile_elems * itemsize + _VMEM_HEADROOM, 16 << 20)
    else:
        # Small ragged element count: flattened 1-D view, single full-extent
        # block, no pad/slice copies.
        work_shape = (total,)
        grid = (1,)
        block = pl.BlockSpec((total,), lambda i: (0,))
        vmem_limit = 48 << 20

    def to_work(a):
        a = a.reshape(-1)
        if a.dtype != dtype:          # no unconditional astype; usually a no-op
            a = a.astype(dtype)
        if needs_pad:
            a = jnp.pad(a, (0, work_shape[0] * _LANES - total))
        return a.reshape(work_shape)

    mem2, spike2, sum2, x2 = map(to_work, (mem, spike, sum_spike, x))

    out_sds = jax.ShapeDtypeStruct(work_shape, dtype)
    cost = pl.CostEstimate(flops=5 * total, transcendentals=0,
                           bytes_accessed=7 * total * itemsize)

    new_spike, new_mem, new_sum = pl.pallas_call(
        functools.partial(_snn_kernel, th=th),
        out_shape=(out_sds, out_sds, out_sds),
        grid=grid,
        in_specs=[block, block, block, block],
        out_specs=(block, block, block),
        # mem->new_mem, spike->new_spike, sum->new_sum (in place when donated).
        input_output_aliases={0: 1, 1: 0, 2: 2},
        compiler_params=pltpu.CompilerParams(
            dimension_semantics=("parallel",),     # v7x: shard row tiles across 2 TCs
            vmem_limit_bytes=int(vmem_limit)),
        cost_estimate=cost,
    )(mem2, spike2, sum2, x2)

    def from_work(a):
        if needs_pad:
            a = a.reshape(-1)[:total]
        return a.reshape(orig_shape)

    return from_work(new_spike), from_work(new_mem), from_work(new_sum)


# ----------------------------------------------------------------------------
# Fused multi-timestep wrapper (state held in VMEM across T steps)
# ----------------------------------------------------------------------------
def snn_activation_steps(xs, mem, spike, sum_spike, th, *, tile_rows=_SCAN_TILE_ROWS):
    """T fused SNNActivation steps.  xs: (T, *shape).

    Returns (spikes[T, *shape], new_mem, new_spike, new_sum_spike).
    Per row tile, mem/spike/sum_spike live in VMEM scratch across all T steps;
    only x(t) is streamed in and spike(t) streamed out each step.
    """
    T = xs.shape[0]
    state_shape = xs.shape[1:]
    dtype = xs.dtype
    itemsize = jnp.dtype(dtype).itemsize
    total = math.prod(state_shape) if state_shape else 1
    th = float(th)

    rows = pl.cdiv(total, _LANES)
    padded = rows * _LANES
    needs_pad = padded != total     # one pad, amortized over all T steps
    # TODO(synk): pad-free ragged handling for the fused path.

    def slab(a):
        a = a.reshape(-1)
        if a.dtype != dtype:
            a = a.astype(dtype)
        if needs_pad:
            a = jnp.pad(a, (0, padded - total))
        return a.reshape(rows, _LANES)

    def slab_t(a):
        a = a.reshape(T, -1)
        if needs_pad:
            a = jnp.pad(a, ((0, 0), (0, padded - total)))
        return a.reshape(T, rows, _LANES)

    mem2, spike2, sum2 = slab(mem), slab(spike), slab(sum_spike)
    xs2 = slab_t(xs)

    tile_r = _pick_row_tile(rows, tile_rows)
    grid = (pl.cdiv(rows, tile_r), T)   # row tiles parallel, time axis sequential

    state_block = pl.BlockSpec((tile_r, _LANES), lambda i, t: (i, 0))
    x_block = pl.BlockSpec((1, tile_r, _LANES), lambda i, t: (t, i, 0))

    out_shape = (jax.ShapeDtypeStruct((T, rows, _LANES), dtype),
                 jax.ShapeDtypeStruct((rows, _LANES), dtype),
                 jax.ShapeDtypeStruct((rows, _LANES), dtype),
                 jax.ShapeDtypeStruct((rows, _LANES), dtype))

    tile_bytes = tile_r * _LANES * itemsize
    # 3 scratch + 6 resident state blocks + 2x2 double-buffered x / spikes.
    vmem_limit = max((3 + 6 + 8) * tile_bytes + _VMEM_HEADROOM, 16 << 20)
    cost = pl.CostEstimate(flops=5 * total * T, transcendentals=0,
                           bytes_accessed=(2 * T + 6) * total * itemsize)

    spikes2, mem_o, spike_o, sum_o = pl.pallas_call(
        functools.partial(_snn_scan_kernel, th=th),
        out_shape=out_shape,
        grid=grid,
        in_specs=[state_block, state_block, state_block, x_block],
        out_specs=(x_block, state_block, state_block, state_block),
        input_output_aliases={0: 1, 1: 2, 2: 3},
        scratch_shapes=[pltpu.VMEM((tile_r, _LANES), dtype)] * 3,
        compiler_params=pltpu.CompilerParams(
            dimension_semantics=("parallel", "arbitrary"),
            vmem_limit_bytes=int(vmem_limit)),
        cost_estimate=cost,
    )(mem2, spike2, sum2, xs2)

    def unslab(a):
        a = a.reshape(-1)
        if needs_pad:
            a = a[:total]
        return a.reshape(state_shape)

    def unslab_t(a):
        a = a.reshape(T, -1)
        if needs_pad:
            a = a[:, :total]
        return a.reshape((T,) + state_shape)

    return unslab_t(spikes2), unslab(mem_o), unslab(spike_o), unslab(sum_o)


# ----------------------------------------------------------------------------
# Self-test
# ----------------------------------------------------------------------------
if __name__ == "__main__":
    th = 0.5

    def reference_step(x, mem, spike, sum_spike):
        new_mem = mem - spike + x
        new_spike = (new_mem >= th).astype(jnp.float32) * th
        new_sum = sum_spike + new_spike
        return new_spike, new_mem, new_sum

    def make_inputs(shape, key):
        k1, k2, k3, k4 = jax.random.split(key, 4)
        x = jax.random.normal(k1, shape, dtype=jnp.float32)
        mem = jax.random.normal(k2, shape, dtype=jnp.float32) * 0.1
        spike = jnp.where(jax.random.normal(k3, shape) > 0.0, th, 0.0).astype(jnp.float32)
        sum_spike = jnp.abs(jax.random.normal(k4, shape, dtype=jnp.float32))
        return x, mem, spike, sum_spike

    def check_close(got, want, tag):
        for g, w in zip(got, want):
            assert g.shape == w.shape and g.dtype == w.dtype, (tag, g.shape, w.shape)
            assert jnp.allclose(g, w, atol=1e-6), f"mismatch: {tag}"

    key = jax.random.PRNGKey(0)
    k1, k2, k3, k4, k5 = jax.random.split(key, 5)

    # 1. Primary NCHW feature-map shape implied by the module (B=2, C=4, H=W=16).
    x, mem, spike, s = make_inputs((2, 4, 16, 16), k1)
    got = snn_activation(x, mem, spike, s, th)
    jax.block_until_ready(got)
    check_close(got, reference_step(x, mem, spike, s), "2x4x16x16")

    # 2. Small ragged element count (pad-free 1-D full-extent block).
    x, mem, spike, s = make_inputs((3, 5, 7, 11), k2)
    got = snn_activation(x, mem, spike, s, th)
    jax.block_until_ready(got)
    check_close(got, reference_step(x, mem, spike, s), "3x5x7x11")

    # 3. Large ragged element count (padded slab fallback, partial row tile).
    x, mem, spike, s = make_inputs((6, 100, 170), k3)
    got = snn_activation(x, mem, spike, s, th)
    jax.block_until_ready(got)
    check_close(got, reference_step(x, mem, spike, s), "6x100x170")

    # 4. Larger multiple-of-128 tensor (multi-tile pipelined grid, >=4 tiles).
    x, mem, spike, s = make_inputs((2, 8, 128, 128), k4)
    got = snn_activation(x, mem, spike, s, th)
    jax.block_until_ready(got)
    check_close(got, reference_step(x, mem, spike, s), "2x8x128x128")

    # 5. Fused multi-timestep kernel vs per-step reference loop.
    T = 4
    shape = (2, 4, 16, 16)
    kx, kstate = jax.random.split(k5)
    xs = jax.random.normal(kx, (T,) + shape, dtype=jnp.float32)
    _, mem, spike, s = make_inputs(shape, kstate)
    spikes, mem_o, spike_o, sum_o = snn_activation_steps(xs, mem, spike, s, th)
    jax.block_until_ready((spikes, mem_o, spike_o, sum_o))
    m_r, sp_r, ss_r = mem, spike, s
    for t in range(T):
        sp_r, m_r, ss_r = reference_step(xs[t], m_r, sp_r, ss_r)
        assert jnp.allclose(spikes[t], sp_r, atol=1e-6), f"fused spike mismatch at t={t}"
    assert jnp.allclose(mem_o, m_r, atol=1e-6), "fused mem mismatch"
    assert jnp.allclose(spike_o, sp_r, atol=1e-6), "fused spike state mismatch"
    assert jnp.allclose(sum_o, ss_r, atol=1e-6), "fused sum_spike mismatch"

    print("KERNEL_OK")
</pallas_src>

<mosaic_0001>
module attributes {stable_mosaic.version = 11 : i64} {
  func.func @_snn_kernel(%arg0: i32, %arg1: memref<16x128xf32, #tpu.memory_space<vmem>>, %arg2: memref<16x128xf32, #tpu.memory_space<vmem>>, %arg3: memref<16x128xf32, #tpu.memory_space<vmem>>, %arg4: memref<16x128xf32, #tpu.memory_space<vmem>>, %arg5: memref<16x128xf32, #tpu.memory_space<vmem>>, %arg6: memref<16x128xf32, #tpu.memory_space<vmem>>, %arg7: memref<16x128xf32, #tpu.memory_space<vmem>>) attributes {dimension_semantics = [#tpu.dimension_semantics<parallel>], iteration_bounds = array<i64: 1>, scalar_prefetch = 0 : i64, scratch_operands = 0 : i64, tpu.core_type = #tpu.core_type<tc>, window_params = [{transform_indices = @transform_0, window_bounds = array<i64: 16, 128>}, {transform_indices = @transform_1, window_bounds = array<i64: 16, 128>}, {transform_indices = @transform_2, window_bounds = array<i64: 16, 128>}, {transform_indices = @transform_3, window_bounds = array<i64: 16, 128>}, {transform_indices = @transform_4, window_bounds = array<i64: 16, 128>}, {transform_indices = @transform_5, window_bounds = array<i64: 16, 128>}, {transform_indices = @transform_6, window_bounds = array<i64: 16, 128>}]} {
    %c0 = arith.constant 0 : index
    %c0_0 = arith.constant 0 : index
    %0 = vector.load %arg1[%c0, %c0_0] : memref<16x128xf32, #tpu.memory_space<vmem>>, vector<16x128xf32>
    %c0_1 = arith.constant 0 : index
    %c0_2 = arith.constant 0 : index
    %1 = vector.load %arg2[%c0_1, %c0_2] : memref<16x128xf32, #tpu.memory_space<vmem>>, vector<16x128xf32>
    %2 = arith.subf %0, %1 : vector<16x128xf32>
    %c0_3 = arith.constant 0 : index
    %c0_4 = arith.constant 0 : index
    %3 = vector.load %arg4[%c0_3, %c0_4] : memref<16x128xf32, #tpu.memory_space<vmem>>, vector<16x128xf32>
    %4 = arith.addf %2, %3 : vector<16x128xf32>
    %cst = arith.constant 5.000000e-01 : f32
    %5 = vector.broadcast %cst : f32 to vector<16x128xf32>
    %6 = arith.cmpf oge, %4, %5 : vector<16x128xf32>
    %cst_5 = arith.constant 0.000000e+00 : f32
    %7 = vector.broadcast %cst_5 : f32 to vector<16x128xf32>
    %cst_6 = arith.constant 5.000000e-01 : f32
    %8 = vector.broadcast %cst_6 : f32 to vector<16x128xf32>
    %9 = arith.select %6, %8, %7 : vector<16x128xi1>, vector<16x128xf32>
    %c0_7 = arith.constant 0 : index
    %c0_8 = arith.constant 0 : index
    %10 = vector.load %arg6[%c0_7, %c0_8] : memref<16x128xf32, #tpu.memory_space<vmem>>, vector<16x128xf32>
    tpu.vector_store %arg6[%c0_7, %c0_8], %4 {strides = array<i32>} : memref<16x128xf32, #tpu.memory_space<vmem>>, vector<16x128xf32>,
    %c0_9 = arith.constant 0 : index
    %c0_10 = arith.constant 0 : index
    %11 = vector.load %arg5[%c0_9, %c0_10] : memref<16x128xf32, #tpu.memory_space<vmem>>, vector<16x128xf32>
    tpu.vector_store %arg5[%c0_9, %c0_10], %9 {strides = array<i32>} : memref<16x128xf32, #tpu.memory_space<vmem>>, vector<16x128xf32>,
    %c0_11 = arith.constant 0 : index
    %c0_12 = arith.constant 0 : index
    %12 = vector.load %arg3[%c0_11, %c0_12] : memref<16x128xf32, #tpu.memory_space<vmem>>, vector<16x128xf32>
    %13 = arith.addf %12, %9 : vector<16x128xf32>
    %c0_13 = arith.constant 0 : index
    %c0_14 = arith.constant 0 : index
    %14 = vector.load %arg7[%c0_13, %c0_14] : memref<16x128xf32, #tpu.memory_space<vmem>>, vector<16x128xf32>
    tpu.vector_store %arg7[%c0_13, %c0_14], %13 {strides = array<i32>} : memref<16x128xf32, #tpu.memory_space<vmem>>, vector<16x128xf32>,
    return
  }
  func.func @transform_0(%arg0: i32) -> (i32, i32) {
    %c0_i32 = arith.constant 0 : i32
    %c0_i32_0 = arith.constant 0 : i32
    return %arg0, %c0_i32 : i32, i32
  }
  func.func @transform_1(%arg0: i32) -> (i32, i32) {
    %c0_i32 = arith.constant 0 : i32
    %c0_i32_0 = arith.constant 0 : i32
    return %arg0, %c0_i32 : i32, i32
  }
  func.func @transform_2(%arg0: i32) -> (i32, i32) {
    %c0_i32 = arith.constant 0 : i32
    %c0_i32_0 = arith.constant 0 : i32
    return %arg0, %c0_i32 : i32, i32
  }
  func.func @transform_3(%arg0: i32) -> (i32, i32) {
    %c0_i32 = arith.constant 0 : i32
    %c0_i32_0 = arith.constant 0 : i32
    return %arg0, %c0_i32 : i32, i32
  }
  func.func @transform_4(%arg0: i32) -> (i32, i32) {
    %c0_i32 = arith.constant 0 : i32
    %c0_i32_0 = arith.constant 0 : i32
    return %arg0, %c0_i32 : i32, i32
  }
  func.func @transform_5(%arg0: i32) -> (i32, i32) {
    %c0_i32 = arith.constant 0 : i32
    %c0_i32_0 = arith.constant 0 : i32
    return %arg0, %c0_i32 : i32, i32
  }
  func.func @transform_6(%arg0: i32) -> (i32, i32) {
    %c0_i32 = arith.constant 0 : i32
    %c0_i32_0 = arith.constant 0 : i32
    return %arg0, %c0_i32 : i32, i32
  }
}

</mosaic_0001>

<llo_original>
// kernel: tpu_custom_call.1
$region0: #{tpu_custom_call.1}
  #allocation0 [shape = 'u32[]', space=smem, size = 0x4, offset = 0x4, fixed_abs, tag = 'smem constant byte address 0x4 - core index']
  #allocation1 [shape = 'u32[144,128]{1,0:T(1,128)}', space=vmem, size = 0x12000, scoped, tag = 'internal scratch']
  %s0 = inlined_call_operand.hbm [shape: f32[16,128], index: 0, kind: input, shape index: {}, may-alias: {0,5}]
  %s1 = inlined_call_operand.hbm [shape: f32[16,128], index: 1, kind: input, shape index: {}, may-alias: {1,4}]
  %s2 = inlined_call_operand.hbm [shape: f32[16,128], index: 2, kind: input, shape index: {}, may-alias: {2,6}]
  %s3 = inlined_call_operand.vmem [shape: f32[16,128], index: 3, kind: input, shape index: {}]
  %s4 = inlined_call_operand.hbm [shape: f32[16,128], index: 4, kind: output, shape index: {0}, may-alias: {1,4}]
  %s5 = inlined_call_operand.hbm [shape: f32[16,128], index: 5, kind: output, shape index: {1}, may-alias: {0,5}]
  %s6 = inlined_call_operand.hbm [shape: f32[16,128], index: 6, kind: output, shape index: {2}, may-alias: {2,6}]
  %7 = xla_tuple %s4, %s5, %s6
  %s8 = sld [smem:[#allocation0]]
  $region54: #{tpu_custom_call.1} parent=0
    _
  %s10 = ssub.s32 1, %s8
  %s11 = scalar_select 0, %s10, %s8
  $region1: #{tpu_custom_call.1} parent=0
    #allocation2 [shape = 'u8[8192]{0}', space=vmem, size = 0x2000, scoped, tag = 'input window, operand 0, single buffered']
    #allocation3 [shape = 's32[1]{0}', space=sflag, size = 0x4, scoped, tag = 'scoped memory for tpu_custom_call.1']
    #allocation4 [shape = 's32[1]{0}', space=sflag, size = 0x4, scoped, tag = 'scoped memory for tpu_custom_call.1']
    #allocation5 [shape = 'u8[8192]{0}', space=vmem, size = 0x2000, scoped, tag = 'input window, operand 1, single buffered']
    #allocation6 [shape = 's32[1]{0}', space=sflag, size = 0x4, scoped, tag = 'scoped memory for tpu_custom_call.1']
    #allocation7 [shape = 'u8[8192]{0}', space=vmem, size = 0x2000, scoped, tag = 'input window, operand 2, single buffered']
    #allocation8 [shape = 'u8[8192]{0}', space=vmem, size = 0x2000, scoped, tag = 'output window, operand 0, single buffered']
    #allocation9 [shape = 'u8[8192]{0}', space=vmem, size = 0x2000, scoped, tag = 'output window, operand 1, single buffered']
    #allocation10 [shape = 's32[1]{0}', space=sflag, size = 0x4, scoped, tag = 'scoped memory for tpu_custom_call.1']
    #allocation11 [shape = 'u8[8192]{0}', space=vmem, size = 0x2000, scoped, tag = 'output window, operand 2, single buffered']
    %12 = vsyncpa [#allocation3], 0
    %13 = vsyncpa [#allocation6], 0
    %14 = vsyncpa [#allocation4], 0
    %15 = vsyncpa [#allocation10], 0
    // Predicated region
    $region2: #{tpu_custom_call.1} parent=1 // pred_check
      _
    $region3: #{tpu_custom_call.1} parent=1 // pred_check_branch
      %17 = sbr.rel (0) target = $region5
    $region4: #{tpu_custom_call.1} parent=1 // pred_region
      %s19 = ssub.s32 256, 256
      %20 = vsyncadd [#allocation3], %s19
      %s21 = sshll.u32 [#allocation2], 4
      %s22 = int_to_ptr.vmem [resolvable:$true] %s21
      %27 = dma.hbm_to_vmem [thread:$0]  %s0, 256, %s22, [#allocation3], 128, 128, 8
    $region5: #{tpu_custom_call.1} parent=1 // pred_fallthru
      _
    // Predicated region
    $region6: #{tpu_custom_call.1} parent=1 // pred_check
      _
    $region7: #{tpu_custom_call.1} parent=1 // pred_check_branch
      %29 = sbr.rel (0) target = $region9
    $region8: #{tpu_custom_call.1} parent=1 // pred_region
      %s31 = ssub.s32 256, 256
      %32 = vsyncadd [#allocation6], %s31
      %s33 = sshll.u32 [#allocation5], 4
      %s34 = int_to_ptr.vmem [resolvable:$true] %s33
      %39 = dma.hbm_to_vmem [thread:$0]  %s1, 256, %s34, [#allocation6], 128, 128, 8
    $region9: #{tpu_custom_call.1} parent=1 // pred_fallthru
      _
    // Predicated region
    $region10: #{tpu_custom_call.1} parent=1 // pred_check
      _
    $region11: #{tpu_custom_call.1} parent=1 // pred_check_branch
      %41 = sbr.rel (0) target = $region13
    $region12: #{tpu_custom_call.1} parent=1 // pred_region
      %s43 = ssub.s32 256, 256
      %44 = vsyncadd [#allocation6], %s43
      %s45 = sshll.u32 [#allocation7], 4
      %s46 = int_to_ptr.vmem [resolvable:$true] %s45
      %51 = dma.hbm_to_vmem [thread:$0]  %s2, 256, %s46, [#allocation6], 128, 128, 8
    $region13: #{tpu_custom_call.1} parent=1 // pred_fallthru
      _
    // Predicated region
    $region14: #{tpu_custom_call.1} parent=1 // pred_check
      _
    $region15: #{tpu_custom_call.1} parent=1 // pred_check_branch
      %53 = sbr.rel (0) target = $region17
    $region16: #{tpu_custom_call.1} parent=1 // pred_region
      _
    $region17: #{tpu_custom_call.1} parent=1 // pred_fallthru
      _
    // Predicated region
    $region18: #{tpu_custom_call.1} parent=1 // pred_check
      _
    $region19: #{tpu_custom_call.1} parent=1 // pred_check_branch
      %55 = sbr.rel (0) target = $region21
    $region20: #{tpu_custom_call.1} parent=1 // pred_region
      %56 = dma.done [#allocation3], 256
    $region21: #{tpu_custom_call.1} parent=1 // pred_fallthru
      _
    // Predicated region
    $region22: #{tpu_custom_call.1} parent=1 // pred_check
      _
    $region23: #{tpu_custom_call.1} parent=1 // pred_check_branch
      %58 = sbr.rel (0) target = $region25
    $region24: #{tpu_custom_call.1} parent=1 // pred_region
      %59 = dma.done [#allocation6], 256
    $region25: #{tpu_custom_call.1} parent=1 // pred_fallthru
      _
    // Predicated region
    $region26: #{tpu_custom_call.1} parent=1 // pred_check
      _
    $region27: #{tpu_custom_call.1} parent=1 // pred_check_branch
      %61 = sbr.rel (0) target = $region29
    $region28: #{tpu_custom_call.1} parent=1 // pred_region
      %62 = dma.done [#allocation6], 256
    $region29: #{tpu_custom_call.1} parent=1 // pred_fallthru
      _
    %v63 = vld [vmem:[#allocation2] sm:$0xff]
    %v64 = vld [vmem:[#allocation2 + $0x8] sm:$0xff]
    %v65 = vld [vmem:[#allocation5] sm:$0xff]
    %v66 = vld [vmem:[#allocation5 + $0x8] sm:$0xff]
    %v67 = vsub.f32 %v63, %v65
    %v68 = vsub.f32 %v64, %v66
    %v69 = vld [vmem:[%s3] sm:$0xff]
    %v70 = vld [vmem:[%s3 + $0x8] sm:$0xff]
    %v71 = vadd.f32 %v67, %v69
    %v72 = vadd.f32 %v68, %v70
    %vm73 = vcmp.ge.f32.partialorder %v71, 0.5
    %vm74 = vcmp.ge.f32.partialorder %v72, 0.5
    %v75 = vsel %vm73, 0.5, 0.0
    %v76 = vsel %vm74, 0.5, 0.0
    %77 = vst [vmem:[#allocation9] sm:$0xff] %v71
    %78 = vst [vmem:[#allocation9 + $0x8] sm:$0xff] %v72
    %79 = vst [vmem:[#allocation8] sm:$0xff] %v75
    %80 = vst [vmem:[#allocation8 + $0x8] sm:$0xff] %v76
    %v81 = vld [vmem:[#allocation7] sm:$0xff]
    %v82 = vld [vmem:[#allocation7 + $0x8] sm:$0xff]
    %v83 = vadd.f32 %v81, %v75
    %v84 = vadd.f32 %v82, %v76
    %85 = vst [vmem:[#allocation11] sm:$0xff] %v83
    %86 = vst [vmem:[#allocation11 + $0x8] sm:$0xff] %v84
    // Predicated region
    $region30: #{tpu_custom_call.1} parent=1 // pred_check
      _
    $region31: #{tpu_custom_call.1} parent=1 // pred_check_branch
      %88 = sbr.rel (0) target = $region33
    $region32: #{tpu_custom_call.1} parent=1 // pred_region
      %s90 = ssub.s32 256, 256
      %91 = vsyncadd [#allocation4], %s90
      %s92 = sshll.u32 [#allocation8], 4
      %s93 = int_to_ptr.vmem [resolvable:$true] %s92
      %98 = dma.vmem_to_hbm [thread:$0]  %s93, 256, %s4, [#allocation4], 128, 128, 8
    $region33: #{tpu_custom_call.1} parent=1 // pred_fallthru
      _
    // Predicated region
    $region34: #{tpu_custom_call.1} parent=1 // pred_check
      _
    $region35: #{tpu_custom_call.1} parent=1 // pred_check_branch
      %100 = sbr.rel (0) target = $region37
    $region36: #{tpu_custom_call.1} parent=1 // pred_region
      %s102 = ssub.s32 256, 256
      %103 = vsyncadd [#allocation10], %s102
      %s104 = sshll.u32 [#allocation9], 4
      %s105 = int_to_ptr.vmem [resolvable:$true] %s104
      %110 = dma.vmem_to_hbm [thread:$0]  %s105, 256, %s5, [#allocation10], 128, 128, 8
    $region37: #{tpu_custom_call.1} parent=1 // pred_fallthru
      _
    // Predicated region
    $region38: #{tpu_custom_call.1} parent=1 // pred_check
      _
    $region39: #{tpu_custom_call.1} parent=1 // pred_check_branch
      %112 = sbr.rel (0) target = $region41
    $region40: #{tpu_custom_call.1} parent=1 // pred_region
      %s114 = ssub.s32 256, 256
      %115 = vsyncadd [#allocation10], %s114
      %s116 = sshll.u32 [#allocation11], 4
      %s117 = int_to_ptr.vmem [resolvable:$true] %s116
      %122 = dma.vmem_to_hbm [thread:$0]  %s117, 256, %s6, [#allocation10], 128, 128, 8
    $region41: #{tpu_custom_call.1} parent=1 // pred_fallthru
      _
    // Predicated region
    $region42: #{tpu_custom_call.1} parent=1 // pred_check
      _
    $region43: #{tpu_custom_call.1} parent=1 // pred_check_branch
      %124 = sbr.rel (0) target = $region45
    $region44: #{tpu_custom_call.1} parent=1 // pred_region
      %125 = dma.done [#allocation4], 256
    $region45: #{tpu_custom_call.1} parent=1 // pred_fallthru
      _
    // Predicated region
    $region46: #{tpu_custom_call.1} parent=1 // pred_check
      _
    $region47: #{tpu_custom_call.1} parent=1 // pred_check_branch
      %127 = sbr.rel (0) target = $region49
    $region48: #{tpu_custom_call.1} parent=1 // pred_region
      %128 = dma.done [#allocation10], 256
    $region49: #{tpu_custom_call.1} parent=1 // pred_fallthru
      _
    // Predicated region
    $region50: #{tpu_custom_call.1} parent=1 // pred_check
      _
    $region51: #{tpu_custom_call.1} parent=1 // pred_check_branch
      %130 = sbr.rel (0) target = $region53
    $region52: #{tpu_custom_call.1} parent=1 // pred_region
      %131 = dma.done [#allocation10], 256
    $region53: #{tpu_custom_call.1} parent=1 // pred_fallthru
      _
    %132 = vsyncpa [#allocation3], 1
    %133 = vsyncpa [#allocation6], 1
    %134 = vsyncpa [#allocation4], 1
    %135 = vsyncpa [#allocation10], 1

</llo_original>
